<compile_context>
chip_gen: v6e
topology: v6e:2x2x1
jax: 0.10.0
libtpu: 0.0.40
codegen_flags: <defaults>
</compile_context>

<pallas_src>
import functools

import jax
import jax.numpy as jnp
from jax.experimental import pallas as pl
from jax.experimental.pallas import tpu as pltpu


def _round_up(v, m):
    return (v + m - 1) // m * m


def _cdiv(a, b):
    return -(-a // b)


def _group_moment2(x2, *, group_num, cg):
    """Per-row mean of x^2 within each channel group.

    x2: (rows, C) f32.  Returns (rows, 1) for group_num == 1, else (rows, C) where every
    channel carries its group's mean (broadcast-ready against x2).  For group_num > 1 the
    per-group reduce and broadcast-back ride the otherwise idle MXU via tiny block-ones
    matmuls, so no per-group channel padding is needed.
    """
    if group_num == 1:
        return jnp.sum(x2, axis=-1, keepdims=True) * (1.0 / cg)
    C = x2.shape[-1]
    cidx = jax.lax.broadcasted_iota(jnp.int32, (C, group_num), 0) // cg
    gidx = jax.lax.broadcasted_iota(jnp.int32, (C, group_num), 1)
    fwd = (cidx == gidx).astype(jnp.float32)                        # (C, G)
    gidx2 = jax.lax.broadcasted_iota(jnp.int32, (group_num, C), 0)
    cidx2 = jax.lax.broadcasted_iota(jnp.int32, (group_num, C), 1) // cg
    bwd = (gidx2 == cidx2).astype(jnp.float32)                      # (G, C)
    gs = jnp.dot(x2, fwd, preferred_element_type=jnp.float32)       # (rows, G) group sums
    m2 = jnp.dot(gs, bwd, preferred_element_type=jnp.float32)       # (rows, C) broadcast back
    return m2 * (1.0 / cg)


# --------------------------------------------------------------------------------------
# Fused single-pass kernel (x fits in VMEM): load x once, stats + normalize + affine.
# --------------------------------------------------------------------------------------
def _fused_kernel(x_ref, w_ref, b_ref, o_ref, *, eps, eps_gp, group_num, cg):
    x = x_ref[...].astype(jnp.float32)                               # (N, C)
    x2 = x * x
    m2 = _group_moment2(x2, group_num=group_num, cg=cg)
    g = x * jax.lax.rsqrt(m2 + eps_gp)
    n = x.shape[0]
    var = jnp.sum(g * g, axis=0, keepdims=True) * (1.0 / n)          # (1, C)
    scale = w_ref[...] * jax.lax.rsqrt(var + eps)                    # (1, C)
    o_ref[...] = (g * scale + b_ref[...]).astype(o_ref.dtype)


# --------------------------------------------------------------------------------------
# Tiled two-pass kernels (large N).
# --------------------------------------------------------------------------------------
def _stats_kernel(x_ref, ss_ref, *, eps_gp, group_num, cg, tile_n,
                  steps_per_slice, n_rows, mask_rows):
    """Pass 1: per-channel (per-slice, per-sublane) partial sums of g^2 over rows."""
    s = pl.program_id(0)
    i = pl.program_id(1)

    @pl.when(i == 0)
    def _():
        ss_ref[...] = jnp.zeros_like(ss_ref)

    x = x_ref[...].astype(jnp.float32)                               # (tile_n, C)
    x2 = x * x
    m2 = _group_moment2(x2, group_num=group_num, cg=cg)
    g2 = x2 * (1.0 / (m2 + eps_gp))                                  # g^2; g never materialized
    if mask_rows:
        row0 = (s * steps_per_slice + i) * tile_n
        rows = row0 + jax.lax.broadcasted_iota(jnp.int32, (tile_n, 1), 0)
        g2 = jnp.where(rows < n_rows, g2, 0.0)
    # Per-sublane partial sums: pure VPU adds; cross-sublane sum done once in the epilogue.
    part = jnp.sum(g2.reshape(tile_n // 8, 8, g2.shape[-1]), axis=0)  # (8, C)
    ss_ref[...] += part


def _apply_kernel(x_ref, scale_ref, bias_ref, o_ref, *, eps_gp, group_num, cg):
    """Pass 2: recompute g from x, then y = g * (w * rsqrt(var + eps)) + b."""
    x = x_ref[...].astype(jnp.float32)
    x2 = x * x
    m2 = _group_moment2(x2, group_num=group_num, cg=cg)
    g = x * jax.lax.rsqrt(m2 + eps_gp)
    o_ref[...] = (g * scale_ref[...] + bias_ref[...]).astype(o_ref.dtype)


# --------------------------------------------------------------------------------------
# Wrapper
# --------------------------------------------------------------------------------------
def minkowski_powernorm_fwd(x, weight, bias, *, group_num=1, eps=1e-5, eps_gp=1e-5,
                            force_two_pass=False, max_tile_rows=None):
    """Forward pass of MinkowskiPowerNorm (training, warmup branch).

    x:      (N, C) sparse-tensor features (any float dtype; math in f32)
    weight: (C,)
    bias:   (C,)
    """
    N, C = x.shape
    assert C % group_num == 0, "num_features must be divisible by group_num"
    cg = C // group_num

    # ---- generation-aware VMEM budgets ----
    try:
        info = pltpu.get_tpu_info()
        vmem_cap = int(getattr(info, "vmem_capacity_bytes", 64 * 2**20))
    except Exception:
        vmem_cap = 64 * 2**20
    if vmem_cap >= 96 * 2**20:        # v5e / v6e: 128 MiB VMEM per TensorCore
        tile_budget = 8 * 2**20       # f32 bytes per x tile
        vmem_limit = 64 * 2**20
    else:                             # v7x: 64 MiB VMEM per TensorCore
        tile_budget = 4 * 2**20
        vmem_limit = 40 * 2**20

    w_row = weight.astype(jnp.float32).reshape(1, C)
    b_row = bias.astype(jnp.float32).reshape(1, C)

    # ---- fused single-pass fast path (x + temporaries + output resident in VMEM) ----
    f32_bytes = N * C * 4
    if (not force_two_pass) and (8 * f32_bytes <= vmem_limit):
        return pl.pallas_call(
            functools.partial(_fused_kernel, eps=eps, eps_gp=eps_gp,
                              group_num=group_num, cg=cg),
            out_shape=jax.ShapeDtypeStruct((N, C), x.dtype),
            compiler_params=pltpu.CompilerParams(vmem_limit_bytes=vmem_limit),
        )(x, w_row, b_row)

    # ---- tiled two-pass path ----
    itemsize = jnp.dtype(x.dtype).itemsize
    rows_align = max(8, 32 // max(1, itemsize))          # 8 f32 / 16 bf16 / 32 int8
    rows_cap = max(rows_align, (tile_budget // (C * 4)) // rows_align * rows_align)
    if max_tile_rows is not None:
        rows_cap = min(rows_cap, max(rows_align,
                                     (max_tile_rows // rows_align) * rows_align))
    # at least two row tiles so both v7x TensorCores get work; ragged tail handled in-kernel
    tile_n = int(min(rows_cap, _round_up(_cdiv(N, 2), rows_align)))
    num_tiles = _cdiv(N, tile_n)
    n_slices = 2 if num_tiles >= 2 else 1
    steps_per_slice = _cdiv(num_tiles, n_slices)
    mask_rows = (n_slices * steps_per_slice * tile_n) != N
    last_tile = num_tiles - 1

    if n_slices * steps_per_slice == num_tiles:
        x1_index = lambda s, i: (s * steps_per_slice + i, 0)
    else:
        # clamp the (at most one) surplus grid step onto the last valid tile;
        # its contribution is zeroed by the in-kernel row mask.
        x1_index = lambda s, i: (jnp.minimum(s * steps_per_slice + i, last_tile), 0)

    # ---- pass 1: batch statistics (per-slice, per-sublane partial sums of g^2) ----
    ss = pl.pallas_call(
        functools.partial(_stats_kernel, eps_gp=eps_gp, group_num=group_num, cg=cg,
                          tile_n=tile_n, steps_per_slice=steps_per_slice,
                          n_rows=N, mask_rows=mask_rows),
        grid=(n_slices, steps_per_slice),
        in_specs=[pl.BlockSpec((tile_n, C), x1_index)],
        out_specs=pl.BlockSpec((8, C), lambda s, i: (s, 0)),
        out_shape=jax.ShapeDtypeStruct((n_slices * 8, C), jnp.float32),
        compiler_params=pltpu.CompilerParams(
            dimension_semantics=("parallel", "arbitrary"),
            vmem_limit_bytes=vmem_limit),
    )(x)

    # Tiny (C,) epilogue in plain JAX: sublane+slice sum, fold weight into the scale.
    var = jnp.sum(ss, axis=0) * (1.0 / N)                            # biased var, true N
    scale = (w_row * jax.lax.rsqrt(var + eps)).reshape(1, C)

    # ---- pass 2: recompute g, normalize + affine (pure load/FMA/store, lane-dense) ----
    y = pl.pallas_call(
        functools.partial(_apply_kernel, eps_gp=eps_gp, group_num=group_num, cg=cg),
        grid=(num_tiles,),
        in_specs=[pl.BlockSpec((tile_n, C), lambda i: (i, 0)),
                  pl.BlockSpec((1, C), lambda i: (0, 0)),
                  pl.BlockSpec((1, C), lambda i: (0, 0))],
        out_specs=pl.BlockSpec((tile_n, C), lambda i: (i, 0)),
        out_shape=jax.ShapeDtypeStruct((N, C), x.dtype),
        compiler_params=pltpu.CompilerParams(
            dimension_semantics=("parallel",),
            vmem_limit_bytes=vmem_limit),
    )(x, scale, b_row)
    return y


def _reference(x, weight, bias, group_num=1, eps=1e-5, eps_gp=1e-5):
    """Pure-JAX reference matching the PyTorch forward (warmup branch)."""
    N, C = x.shape
    cg = C // group_num
    xg = x.reshape(N, group_num, cg)
    m2 = jnp.mean(xg * xg, axis=2, keepdims=True)
    m2 = jnp.broadcast_to(m2, (N, group_num, cg)).reshape(N, C)
    g = x / jnp.sqrt(m2 + eps_gp)
    var = jnp.mean(g * g, axis=0)                                    # (C,)
    z = g / jnp.sqrt(var + eps)
    return weight * z + bias


if __name__ == "__main__":
    key = jax.random.PRNGKey(0)

    configs = [
        # (N, C, group_num, dtype, force_two_pass, max_tile_rows)
        (64, 32, 1, jnp.float32, False, None),    # fused path, single group, narrow C
        (197, 256, 4, jnp.float32, False, None),  # fused path, MXU block-ones group path
        (197, 256, 4, jnp.float32, True, 48),     # tiled: ragged tiles, 2-slice stats, masking
        (64, 32, 1, jnp.float32, True, 16),       # tiled: exact division, no masking
        (200, 64, 2, jnp.bfloat16, True, 32),     # tiled: bf16 (16-row sublane alignment)
    ]
    for (N, C, gnum, dtype, force, mtr) in configs:
        kx, kw, kb = jax.random.split(jax.random.fold_in(key, N * 1000 + C), 3)
        x = jax.random.normal(kx, (N, C), dtype=jnp.float32).astype(dtype)
        # __init__ uses ones/zeros; use non-trivial values so the affine path is exercised.
        weight = 1.0 + 0.1 * jax.random.normal(kw, (C,), dtype=jnp.float32)
        bias = 0.1 * jax.random.normal(kb, (C,), dtype=jnp.float32)

        y = minkowski_powernorm_fwd(x, weight, bias, group_num=gnum,
                                    force_two_pass=force, max_tile_rows=mtr)
        y = jax.block_until_ready(y)

        y_ref = _reference(x.astype(jnp.float32), weight, bias, group_num=gnum)
        assert y.shape == (N, C)
        tol = 1e-4 if dtype == jnp.float32 else 5e-2
        err = float(jnp.max(jnp.abs(y.astype(jnp.float32) - y_ref)))
        assert err < tol, (N, C, gnum, str(dtype), force, mtr, err)

    print("KERNEL_OK")
</pallas_src>

<mosaic_0001>
module attributes {stable_mosaic.version = 11 : i64} {
  func.func @_fused_kernel(%arg0: memref<64x32xf32, #tpu.memory_space<vmem>>, %arg1: memref<1x32xf32, #tpu.memory_space<vmem>>, %arg2: memref<1x32xf32, #tpu.memory_space<vmem>>, %arg3: memref<64x32xf32, #tpu.memory_space<vmem>>) attributes {dimension_semantics = [], scalar_prefetch = 0 : i64, scratch_operands = 0 : i64, tpu.core_type = #tpu.core_type<tc>} {
    %c0 = arith.constant 0 : index
    %c0_0 = arith.constant 0 : index
    %0 = vector.load %arg0[%c0, %c0_0] : memref<64x32xf32, #tpu.memory_space<vmem>>, vector<64x32xf32>
    %1 = arith.mulf %0, %0 : vector<64x32xf32>
    %cst = arith.constant dense<0.000000e+00> : vector<64xf32>
    %2 = vector.multi_reduction <add>, %1, %cst [1] : vector<64x32xf32> to vector<64xf32>
    %3 = vector.shape_cast %2 : vector<64xf32> to vector<64x1xf32>
    %cst_1 = arith.constant 3.125000e-02 : f32
    %4 = vector.broadcast %cst_1 : f32 to vector<64x1xf32>
    %5 = arith.mulf %3, %4 : vector<64x1xf32>
    %cst_2 = arith.constant 9.99999974E-6 : f32
    %6 = vector.broadcast %cst_2 : f32 to vector<64x1xf32>
    %7 = arith.addf %5, %6 : vector<64x1xf32>
    %8 = math.rsqrt %7 : vector<64x1xf32>
    %9 = vector.broadcast %8 : vector<64x1xf32> to vector<64x32xf32>
    %10 = arith.mulf %0, %9 : vector<64x32xf32>
    %11 = arith.mulf %10, %10 : vector<64x32xf32>
    %cst_3 = arith.constant dense<0.000000e+00> : vector<32xf32>
    %12 = vector.multi_reduction <add>, %11, %cst_3 [0] : vector<64x32xf32> to vector<32xf32>
    %13 = vector.shape_cast %12 : vector<32xf32> to vector<1x32xf32>
    %cst_4 = arith.constant 1.562500e-02 : f32
    %14 = vector.broadcast %cst_4 : f32 to vector<1x32xf32>
    %15 = arith.mulf %13, %14 : vector<1x32xf32>
    %c0_5 = arith.constant 0 : index
    %c0_6 = arith.constant 0 : index
    %16 = vector.load %arg1[%c0_5, %c0_6] : memref<1x32xf32, #tpu.memory_space<vmem>>, vector<1x32xf32>
    %cst_7 = arith.constant 9.99999974E-6 : f32
    %17 = vector.broadcast %cst_7 : f32 to vector<1x32xf32>
    %18 = arith.addf %15, %17 : vector<1x32xf32>
    %19 = math.rsqrt %18 : vector<1x32xf32>
    %20 = arith.mulf %16, %19 : vector<1x32xf32>
    %21 = vector.broadcast %20 : vector<1x32xf32> to vector<64x32xf32>
    %22 = arith.mulf %10, %21 : vector<64x32xf32>
    %c0_8 = arith.constant 0 : index
    %c0_9 = arith.constant 0 : index
    %23 = vector.load %arg2[%c0_8, %c0_9] : memref<1x32xf32, #tpu.memory_space<vmem>>, vector<1x32xf32>
    %24 = vector.broadcast %23 : vector<1x32xf32> to vector<64x32xf32>
    %25 = arith.addf %22, %24 : vector<64x32xf32>
    %c0_10 = arith.constant 0 : index
    %c0_11 = arith.constant 0 : index
    %26 = vector.load %arg3[%c0_10, %c0_11] : memref<64x32xf32, #tpu.memory_space<vmem>>, vector<64x32xf32>
    tpu.vector_store %arg3[%c0_10, %c0_11], %25 {strides = array<i32>} : memref<64x32xf32, #tpu.memory_space<vmem>>, vector<64x32xf32>,
    return
  }
}

</mosaic_0001>

<llo_original>
// kernel: tpu_custom_call.1
$region0: #{tpu_custom_call.1}
  #allocation0 [shape = 'u32[]', space=smem, size = 0x4, offset = 0x4, fixed_abs, tag = 'smem constant byte address 0x4 - core index']
  #allocation1 [shape = 'u32[144,128]{1,0:T(1,128)}', space=vmem, size = 0x12000, scoped, tag = 'internal scratch']
  %s0 = inlined_call_operand.vmem [shape: f32[64,32], index: 0, kind: input, shape index: {}]
  %s1 = inlined_call_operand.vmem [shape: f32[1,32], index: 1, kind: input, shape index: {}]
  %s2 = inlined_call_operand.vmem [shape: f32[1,32], index: 2, kind: input, shape index: {}]
  %s3 = inlined_call_operand.vmem [shape: f32[64,32], index: 3, kind: output, shape index: {}]
  %s4 = sld [smem:[#allocation0]]
  $region22: #{tpu_custom_call.1} parent=0
    _
  %s6 = ssub.s32 1, %s4
  %s7 = scalar_select 0, %s6, %s4
  // Predicated region
  $region2: #{tpu_custom_call.1} parent=0 // pred_check
    _
  $region3: #{tpu_custom_call.1} parent=0 // pred_check_branch
    %9 = sbr.rel (0) target = $region5
  $region4: #{tpu_custom_call.1} parent=0 // pred_region
    _
  $region5: #{tpu_custom_call.1} parent=0 // pred_fallthru
    _
  // Predicated region
  $region6: #{tpu_custom_call.1} parent=0 // pred_check
    _
  $region7: #{tpu_custom_call.1} parent=0 // pred_check_branch
    %11 = sbr.rel (0) target = $region9
  $region8: #{tpu_custom_call.1} parent=0 // pred_region
    _
  $region9: #{tpu_custom_call.1} parent=0 // pred_fallthru
    _
  // Predicated region
  $region10: #{tpu_custom_call.1} parent=0 // pred_check
    _
  $region11: #{tpu_custom_call.1} parent=0 // pred_check_branch
    %13 = sbr.rel (0) target = $region13
  $region12: #{tpu_custom_call.1} parent=0 // pred_region
    _
  $region13: #{tpu_custom_call.1} parent=0 // pred_fallthru
    _
  %v14 = vld [vmem:[%s0] sm:$0xff]
  %v15 = vld [vmem:[%s0 + $0x8] sm:$0xff]
  %v16 = vld [vmem:[%s0 + $0x10] sm:$0xff]
  %v17 = vld [vmem:[%s0 + $0x18] sm:$0xff]
  %v18 = vld [vmem:[%s0 + $0x20] sm:$0xff]
  %v19 = vld [vmem:[%s0 + $0x28] sm:$0xff]
  %v20 = vld [vmem:[%s0 + $0x30] sm:$0xff]
  %v21 = vld [vmem:[%s0 + $0x38] sm:$0xff]
  %v22 = vmul.f32 %v14, %v14
  %v23 = vmul.f32 %v15, %v15
  %v24 = vmul.f32 %v16, %v16
  %v25 = vmul.f32 %v17, %v17
  %v26 = vmul.f32 %v18, %v18
  %v27 = vmul.f32 %v19, %v19
  %v28 = vmul.f32 %v20, %v20
  %v29 = vmul.f32 %v21, %v21
  %vm30 = vcmask 261120
  %v31 = vsel %vm30, %v22, 0.0
  %32 = vadd.xlane.f32.xlu0 %v31
  %v33 = vpop.xlane.xlu0 %32
  %v34 = vsel %vm30, %v23, 0.0
  %35 = vadd.xlane.f32.xlu0 %v34
  %v36 = vpop.xlane.xlu0 %35
  %v37 = vsel %vm30, %v24, 0.0
  %38 = vadd.xlane.f32.xlu0 %v37
  %v39 = vpop.xlane.xlu0 %38
  %v40 = vsel %vm30, %v25, 0.0
  %41 = vadd.xlane.f32.xlu0 %v40
  %v42 = vpop.xlane.xlu0 %41
  %v43 = vsel %vm30, %v26, 0.0
  %44 = vadd.xlane.f32.xlu0 %v43
  %v45 = vpop.xlane.xlu0 %44
  %v46 = vsel %vm30, %v27, 0.0
  %47 = vadd.xlane.f32.xlu0 %v46
  %v48 = vpop.xlane.xlu0 %47
  %v49 = vsel %vm30, %v28, 0.0
  %50 = vadd.xlane.f32.xlu0 %v49
  %v51 = vpop.xlane.xlu0 %50
  %v52 = vsel %vm30, %v29, 0.0
  %53 = vadd.xlane.f32.xlu0 %v52
  %v54 = vpop.xlane.xlu0 %53
  %v55 = vmul.f32 %v33, 0.03125
  %v56 = vmul.f32 %v36, 0.03125
  %v57 = vmul.f32 %v39, 0.03125
  %v58 = vmul.f32 %v42, 0.03125
  %v59 = vmul.f32 %v45, 0.03125
  %v60 = vmul.f32 %v48, 0.03125
  %v61 = vmul.f32 %v51, 0.03125
  %v62 = vmul.f32 %v54, 0.03125
  %v63 = vadd.f32 %v55, 1e-05
  %v64 = vadd.f32 %v56, 1e-05
  %v65 = vadd.f32 %v57, 1e-05
  %v66 = vadd.f32 %v58, 1e-05
  %v67 = vadd.f32 %v59, 1e-05
  %v68 = vadd.f32 %v60, 1e-05
  %v69 = vadd.f32 %v61, 1e-05
  %v70 = vadd.f32 %v62, 1e-05
  %v71 = vrsqrt.pop %v63
  %v72 = vrsqrt.pop %v64
  %v73 = vrsqrt.pop %v65
  %v74 = vrsqrt.pop %v66
  %v75 = vrsqrt.pop %v67
  %v76 = vrsqrt.pop %v68
  %v77 = vrsqrt.pop %v69
  %v78 = vrsqrt.pop %v70
  %v79 = vmul.f32 %v14, %v71
  %v80 = vmul.f32 %v15, %v72
  %v81 = vmul.f32 %v16, %v73
  %v82 = vmul.f32 %v17, %v74
  %v83 = vmul.f32 %v18, %v75
  %v84 = vmul.f32 %v19, %v76
  %v85 = vmul.f32 %v20, %v77
  %v86 = vmul.f32 %v21, %v78
  %v87 = vmul.f32 %v79, %v79
  %v88 = vmul.f32 %v80, %v80
  %v89 = vmul.f32 %v81, %v81
  %v90 = vmul.f32 %v82, %v82
  %v91 = vmul.f32 %v83, %v83
  %v92 = vmul.f32 %v84, %v84
  %v93 = vmul.f32 %v85, %v85
  %v94 = vmul.f32 %v86, %v86
  %v95 = vsel %vm30, %v87, 0.0
  %v96 = vsel %vm30, %v88, 0.0
  %v97 = vadd.f32 %v95, %v96
  %v98 = vsel %vm30, %v89, 0.0
  %v99 = vadd.f32 %v97, %v98
  %v100 = vsel %vm30, %v90, 0.0
  %v101 = vadd.f32 %v99, %v100
  %v102 = vsel %vm30, %v91, 0.0
  %v103 = vadd.f32 %v101, %v102
  %v104 = vsel %vm30, %v92, 0.0
  %v105 = vadd.f32 %v103, %v104
  %v106 = vsel %vm30, %v93, 0.0
  %v107 = vadd.f32 %v105, %v106
  %v108 = vsel %vm30, %v94, 0.0
  %v109 = vadd.f32 %v107, %v108
  %v110 = vrot.slane %v109, 4
  %v111 = vadd.f32 %v109, %v110
  %v112 = vrot.slane %v111, 2
  %v113 = vadd.f32 %v111, %v112
  %v114 = vrot.slane %v113, 1
  %v115 = vadd.f32 %v113, %v114
  %v116 = vmul.f32 %v115, 0.015625
  %v117 = vld [vmem:[%s1] sm:$0x1]
  %v118 = vadd.f32 %v116, 1e-05
  %v119 = vrsqrt.pop %v118
  %v120 = vmul.f32 %v117, %v119
  %v122 = vlaneseq
  %v123 = vshrl.u32 %v122, 7
  %v124 = vsub.s32 0, %v123
  %v125 = vrot.slane %v120, %v124
  %v127 = vmul.f32 %v79, %v125
  %v128 = vmul.f32 %v80, %v125
  %v129 = vmul.f32 %v81, %v125
  %v130 = vmul.f32 %v82, %v125
  %v131 = vmul.f32 %v83, %v125
  %v132 = vmul.f32 %v84, %v125
  %v133 = vmul.f32 %v85, %v125
  %v134 = vmul.f32 %v86, %v125
  %v135 = vld [vmem:[%s2] sm:$0x1]
  %v137 = vlaneseq
  %v138 = vshrl.u32 %v137, 7
  %v139 = vsub.s32 0, %v138
  %v140 = vrot.slane %v135, %v139
  %v142 = vadd.f32 %v127, %v140
  %v143 = vadd.f32 %v128, %v140
  %v144 = vadd.f32 %v129, %v140
  %v145 = vadd.f32 %v130, %v140
  %v146 = vadd.f32 %v131, %v140
  %v147 = vadd.f32 %v132, %v140
  %v148 = vadd.f32 %v133, %v140
  %v149 = vadd.f32 %v134, %v140
  %150 = vst.msk [vmem:[%s3] sm:$0xff] %vm30, %v142
  %151 = vst.msk [vmem:[%s3 + $0x8] sm:$0xff] %vm30, %v143
  %152 = vst.msk [vmem:[%s3 + $0x10] sm:$0xff] %vm30, %v144
  %153 = vst.msk [vmem:[%s3 + $0x18] sm:$0xff] %vm30, %v145
  %154 = vst.msk [vmem:[%s3 + $0x20] sm:$0xff] %vm30, %v146
  %155 = vst.msk [vmem:[%s3 + $0x28] sm:$0xff] %vm30, %v147
  %156 = vst.msk [vmem:[%s3 + $0x30] sm:$0xff] %vm30, %v148
  %157 = vst.msk [vmem:[%s3 + $0x38] sm:$0xff] %vm30, %v149
  // Predicated region
  $region14: #{tpu_custom_call.1} parent=0 // pred_check
    _
  $region15: #{tpu_custom_call.1} parent=0 // pred_check_branch
    %159 = sbr.rel (0) target = $region17
  $region16: #{tpu_custom_call.1} parent=0 // pred_region
    _
  $region17: #{tpu_custom_call.1} parent=0 // pred_fallthru
    _
  // Predicated region
  $region18: #{tpu_custom_call.1} parent=0 // pred_check
    _
  $region19: #{tpu_custom_call.1} parent=0 // pred_check_branch
    %161 = sbr.rel (0) target = $region21
  $region20: #{tpu_custom_call.1} parent=0 // pred_region
    _
  $region21: #{tpu_custom_call.1} parent=0 // pred_fallthru
    _

</llo_original>
